<compile_context>
chip_gen: v6e
topology: v6e:2x2x1
jax: 0.10.0
libtpu: 0.0.40
codegen_flags: <defaults>
</compile_context>

<pallas_src>
import math
import functools

import jax
import jax.numpy as jnp
from jax.experimental import pallas as pl
from jax.experimental.pallas import tpu as pltpu


_LANE = 128
# Conservative double-buffered working-set budget: safe on v7x (64 MiB
# physical / 32 MiB scoped default) and trivially safe on v5e/v6e (128 MiB).
_VMEM_BUDGET_BYTES = 40 * 1024 * 1024
_VMEM_LIMIT_CLAMP = 48 * 1024 * 1024
# Target ~8 MiB of streamed weights per grid step (multi-us DMA per step).
_DEFAULT_WEIGHT_TILE_BYTES = 8 * 1024 * 1024
# Below this streamed-tile size (and with a long grid) deepen the pipeline.
_SMALL_TILE_BYTES = 512 * 1024


def _round_up(x, m):
    return ((x + m - 1) // m) * m


def _noise_embed_kernel(x_ref, w_ref, b_ref, o_ref, *, scale):
    # x_ref: (B, K), w_ref: (K, TN), b_ref: (1, TN) f32, o_ref: (B, TN).
    # MXU matmul with f32 accumulation; bias + sqrt(E) scale fused on the VPU.
    x = x_ref[...].astype(w_ref.dtype)        # bf16 weights -> bf16 MXU dot
    acc = jnp.dot(x, w_ref[...], preferred_element_type=jnp.float32)
    o_ref[...] = ((acc + b_ref[...]) * scale).astype(o_ref.dtype)


def _select_tiling(out_features, noise_dim, batch, w_itemsize, out_itemsize,
                   target_weight_tile_bytes, tile_n_cap):
    """Pick (tile_n, grid_n, padded_n).

    tile_n is a multiple of 128 sized so the streamed weight tile hits the
    byte target, bounded by the double-buffered VMEM budget.  out_features is
    padded up so grid_n * tile_n covers it with at most grid_n*128 wasted
    columns (no masked stores, no exact-divisibility requirement).
    """
    n_pad = _round_up(out_features, _LANE)

    # Columns per tile to reach the target weight-tile byte size.
    tn_target = target_weight_tile_bytes // max(1, noise_dim * w_itemsize)
    tn_target = max(_LANE, (tn_target // _LANE) * _LANE)

    # Bound by the double-buffered VMEM working set (weight + bias + output).
    per_col = 2 * (noise_dim * w_itemsize + 4 + batch * out_itemsize)
    fixed = 2 * batch * noise_dim * 4 + (2 << 20)  # resident activation + slack
    tn_vmem = max(_LANE, ((_VMEM_BUDGET_BYTES - fixed) // per_col // _LANE) * _LANE)

    tn_cap = min(tn_target, tn_vmem, n_pad)
    if tile_n_cap is not None:
        tn_cap = min(tn_cap, max(_LANE, (int(tile_n_cap) // _LANE) * _LANE))

    grid_n = -(-n_pad // tn_cap)
    tn = _round_up(-(-n_pad // grid_n), _LANE)
    return tn, grid_n, grid_n * tn


def noise_to_rna_embedding(noise, weight, bias, sequence_length, embedding_size,
                           *, stream_weights_bf16=False, tile_n_cap=None,
                           target_weight_tile_bytes=_DEFAULT_WEIGHT_TILE_BYTES):
    """noise: (B, noise_dim); weight: (noise_dim, S*E); bias: (S*E,)."""
    batch, noise_dim = noise.shape
    out_features = sequence_length * embedding_size
    assert weight.shape == (noise_dim, out_features)
    assert bias.shape == (out_features,)

    scale = float(math.sqrt(embedding_size))
    out_dtype = noise.dtype

    # Optional bandwidth optimization: stream bf16 weights (f32 accumulation).
    w = weight.astype(jnp.bfloat16) if stream_weights_bf16 else weight
    b = bias.astype(jnp.float32)
    w_itemsize = w.dtype.itemsize
    out_itemsize = jnp.dtype(out_dtype).itemsize

    tn, grid_n, n_total = _select_tiling(
        out_features, noise_dim, batch, w_itemsize, out_itemsize,
        target_weight_tile_bytes, tile_n_cap)

    # Zero-pad the feature axis so every tile is full-width and lane-dense
    # (padded columns produce zeros and are sliced off below).
    if n_total != out_features:
        w = jnp.pad(w, ((0, 0), (0, n_total - out_features)))
        b = jnp.pad(b, (0, n_total - out_features))
    b2d = b.reshape(1, n_total)

    # Deepen the weight prefetch pipeline only when tiles are genuinely small
    # and the grid is long (per-step overhead regime); big tiles don't need it.
    weight_tile_bytes = noise_dim * tn * w_itemsize
    deep_prefetch = (grid_n >= 3) and (weight_tile_bytes < _SMALL_TILE_BYTES)
    if deep_prefetch:
        w_spec = pl.BlockSpec((noise_dim, tn), lambda j: (0, j),
                              pipeline_mode=pl.Buffered(3))
        n_buf_w = 3
    else:
        w_spec = pl.BlockSpec((noise_dim, tn), lambda j: (0, j))
        n_buf_w = 2

    # Explicit scoped-VMEM limit sized from the actual working set (needed on
    # v5e whose default is 16 MiB), clamped well under v7x's 64 MiB physical.
    vmem_need = (n_buf_w * noise_dim * tn * w_itemsize      # streamed weights
                 + 2 * tn * 4                               # bias tiles (f32)
                 + 2 * batch * tn * out_itemsize            # output tiles
                 + 2 * batch * noise_dim * noise.dtype.itemsize)
    vmem_limit = int(min(_VMEM_LIMIT_CLAMP, max(16 << 20, vmem_need + (4 << 20))))

    bytes_accessed = (noise.size * noise.dtype.itemsize
                      + noise_dim * n_total * w_itemsize
                      + n_total * 4
                      + batch * n_total * out_itemsize)
    cost = pl.CostEstimate(
        flops=2 * batch * noise_dim * n_total,
        transcendentals=0,
        bytes_accessed=int(bytes_accessed),
    )

    out_flat = pl.pallas_call(
        functools.partial(_noise_embed_kernel, scale=scale),
        out_shape=jax.ShapeDtypeStruct((batch, n_total), out_dtype),
        grid_spec=pltpu.PrefetchScalarGridSpec(
            num_scalar_prefetch=0,
            grid=(grid_n,),
            in_specs=[
                # Tiny activation block: resident across all N steps.
                pl.BlockSpec((batch, noise_dim), lambda j: (0, 0)),
                # Streamed weight tiles (the only real HBM traffic).
                w_spec,
                pl.BlockSpec((1, tn), lambda j: (0, j)),
            ],
            out_specs=pl.BlockSpec((batch, tn), lambda j: (0, j)),
        ),
        compiler_params=pltpu.CompilerParams(
            # Independent output tiles -> shardable across TCs.
            dimension_semantics=("parallel",),
            vmem_limit_bytes=vmem_limit,
        ),
        cost_estimate=cost,
    )(noise, w, b2d)

    if n_total != out_features:
        out_flat = out_flat[:, :out_features]
    return out_flat.reshape(batch, sequence_length, embedding_size)


def _reference(noise, weight, bias, sequence_length, embedding_size):
    h = noise @ weight + bias
    return (h.reshape(noise.shape[0], sequence_length, embedding_size)
            * math.sqrt(embedding_size)).astype(noise.dtype)


if __name__ == "__main__":
    key = jax.random.PRNGKey(0)
    k_noise, k_p1, k_p2, k_p3 = jax.random.split(key, 4)

    def make_params(k, noise_dim, out_features):
        kw, kb = jax.random.split(k)
        bound = 1.0 / math.sqrt(noise_dim)
        w = jax.random.uniform(kw, (noise_dim, out_features),
                               minval=-bound, maxval=bound, dtype=jnp.float32)
        b = jax.random.uniform(kb, (out_features,),
                               minval=-bound, maxval=bound, dtype=jnp.float32)
        return w, b

    # Small shapes consistent with the module's forward.
    batch, noise_dim = 2, 16
    noise = jax.random.normal(k_noise, (batch, noise_dim), dtype=jnp.float32)

    # Config A: S=8, E=32 (out_features=256) -> single lane-dense tile.
    S, E = 8, 32
    w, b = make_params(k_p1, noise_dim, S * E)
    out = jax.block_until_ready(noise_to_rna_embedding(noise, w, b, S, E))
    ref = _reference(noise, w, b, S, E)
    assert out.shape == (batch, S, E)
    assert jnp.allclose(out, ref, atol=1e-5, rtol=1e-5)

    # Multi-step pipelined grid: force 256 feats -> two 128-lane tiles.
    out_tiled = jax.block_until_ready(
        noise_to_rna_embedding(noise, w, b, S, E, tile_n_cap=128))
    assert jnp.allclose(out_tiled, ref, atol=1e-5, rtol=1e-5)

    # bf16 weight streaming (halves weight HBM traffic), f32 accumulation.
    out_bf16 = jax.block_until_ready(
        noise_to_rna_embedding(noise, w, b, S, E, stream_weights_bf16=True))
    ref_bf16 = _reference(noise.astype(jnp.bfloat16).astype(jnp.float32),
                          w.astype(jnp.bfloat16).astype(jnp.float32), b, S, E)
    assert jnp.allclose(out_bf16, ref_bf16, atol=1e-3, rtol=1e-3)

    # Config B: S=16, E=32 with forced tiny tiles -> long grid, exercises the
    # deep (3-buffer) weight prefetch path.
    S2, E2 = 16, 32
    w2, b2 = make_params(k_p2, noise_dim, S2 * E2)
    out_deep = jax.block_until_ready(
        noise_to_rna_embedding(noise, w2, b2, S2, E2, tile_n_cap=128))
    assert jnp.allclose(out_deep, _reference(noise, w2, b2, S2, E2),
                        atol=1e-5, rtol=1e-5)

    # Config C: out_features=100 (not a multiple of 128) -> padded, lane-dense
    # tile + output slicing path.
    S3, E3 = 5, 20
    w3, b3 = make_params(k_p3, noise_dim, S3 * E3)
    out_pad = jax.block_until_ready(noise_to_rna_embedding(noise, w3, b3, S3, E3))
    assert out_pad.shape == (batch, S3, E3)
    assert jnp.allclose(out_pad, _reference(noise, w3, b3, S3, E3),
                        atol=1e-5, rtol=1e-5)

    print("KERNEL_OK")
</pallas_src>

<mosaic_0001>
module attributes {stable_mosaic.version = 11 : i64} {
  func.func @_noise_embed_kernel(%arg0: i32, %arg1: memref<2x16xf32, #tpu.memory_space<vmem>>, %arg2: memref<16x256xf32, #tpu.memory_space<vmem>>, %arg3: memref<1x256xf32, #tpu.memory_space<vmem>>, %arg4: memref<2x256xf32, #tpu.memory_space<vmem>>) attributes {dimension_semantics = [#tpu.dimension_semantics<parallel>], iteration_bounds = array<i64: 1>, scalar_prefetch = 0 : i64, scratch_operands = 0 : i64, tpu.core_type = #tpu.core_type<tc>, window_params = [{pipeline_mode = #tpu.pipeline_mode<synchronous>, transform_indices = @transform_0, window_bounds = array<i64: 2, 16>}, {transform_indices = @transform_1, window_bounds = array<i64: 16, 256>}, {transform_indices = @transform_2, window_bounds = array<i64: 1, 256>}, {transform_indices = @transform_3, window_bounds = array<i64: 2, 256>}]} {
    %c0 = arith.constant 0 : index
    %c0_0 = arith.constant 0 : index
    %0 = vector.load %arg1[%c0, %c0_0] : memref<2x16xf32, #tpu.memory_space<vmem>>, vector<2x16xf32>
    %c0_1 = arith.constant 0 : index
    %c0_2 = arith.constant 0 : index
    %1 = vector.load %arg2[%c0_1, %c0_2] : memref<16x256xf32, #tpu.memory_space<vmem>>, vector<16x256xf32>
    %cst = arith.constant dense<0.000000e+00> : vector<2x256xf32>
    %2 = tpu.matmul %0, %1, %cst {dimension_numbers = #tpu.dot_dimension_numbers<[1], [0], [0], [1], [0, 0, 1, 1], [], []>} : vector<2x16xf32>, vector<16x256xf32>, vector<2x256xf32> -> vector<2x256xf32>
    %c0_3 = arith.constant 0 : index
    %c0_4 = arith.constant 0 : index
    %3 = vector.load %arg3[%c0_3, %c0_4] : memref<1x256xf32, #tpu.memory_space<vmem>>, vector<1x256xf32>
    %4 = vector.broadcast %3 : vector<1x256xf32> to vector<2x256xf32>
    %5 = arith.addf %2, %4 : vector<2x256xf32>
    %cst_5 = arith.constant 5.65685415 : f32
    %6 = vector.broadcast %cst_5 : f32 to vector<2x256xf32>
    %7 = arith.mulf %5, %6 : vector<2x256xf32>
    %c0_6 = arith.constant 0 : index
    %c0_7 = arith.constant 0 : index
    %8 = vector.load %arg4[%c0_6, %c0_7] : memref<2x256xf32, #tpu.memory_space<vmem>>, vector<2x256xf32>
    tpu.vector_store %arg4[%c0_6, %c0_7], %7 {strides = array<i32>} : memref<2x256xf32, #tpu.memory_space<vmem>>, vector<2x256xf32>,
    return
  }
  func.func @transform_0(%arg0: i32) -> (i32, i32) {
    %c0_i32 = arith.constant 0 : i32
    %c0_i32_0 = arith.constant 0 : i32
    %c0_i32_1 = arith.constant 0 : i32
    return %c0_i32, %c0_i32_0 : i32, i32
  }
  func.func @transform_1(%arg0: i32) -> (i32, i32) {
    %c0_i32 = arith.constant 0 : i32
    %c0_i32_0 = arith.constant 0 : i32
    return %c0_i32, %arg0 : i32, i32
  }
  func.func @transform_2(%arg0: i32) -> (i32, i32) {
    %c0_i32 = arith.constant 0 : i32
    %c0_i32_0 = arith.constant 0 : i32
    return %c0_i32, %arg0 : i32, i32
  }
  func.func @transform_3(%arg0: i32) -> (i32, i32) {
    %c0_i32 = arith.constant 0 : i32
    %c0_i32_0 = arith.constant 0 : i32
    return %c0_i32, %arg0 : i32, i32
  }
}

</mosaic_0001>

<llo_original>
// kernel: tpu_custom_call.1
$region0: #{tpu_custom_call.1}
  #allocation0 [shape = 'u32[]', space=smem, size = 0x4, offset = 0x4, fixed_abs, tag = 'smem constant byte address 0x4 - core index']
  #allocation1 [shape = 'u32[144,128]{1,0:T(1,128)}', space=vmem, size = 0x12000, scoped, tag = 'internal scratch']
  %s0 = inlined_call_operand.hbm [shape: f32[2,16], index: 0, kind: input, shape index: {}]
  %s1 = inlined_call_operand.hbm [shape: f32[16,256], index: 1, kind: input, shape index: {}]
  %s2 = inlined_call_operand.vmem [shape: f32[1,256], index: 2, kind: input, shape index: {}]
  %s3 = inlined_call_operand.hbm [shape: f32[2,256], index: 3, kind: output, shape index: {}]
  %s4 = sld [smem:[#allocation0]]
  $region30: #{tpu_custom_call.1} parent=0
    _
  %s6 = ssub.s32 1, %s4
  %s7 = scalar_select 0, %s6, %s4
  $region1: #{tpu_custom_call.1} parent=0
    #allocation2 [shape = 'u8[1024]{0}', space=vmem, size = 0x400, scoped, tag = 'input window, operand 0, single buffered']
    #allocation3 [shape = 's32[1]{0}', space=sflag, size = 0x4, scoped, tag = 'scoped memory for tpu_custom_call.1']
    #allocation4 [shape = 's32[1]{0}', space=sflag, size = 0x4, scoped, tag = 'scoped memory for tpu_custom_call.1']
    #allocation5 [shape = 'u8[16384]{0}', space=vmem, size = 0x4000, scoped, tag = 'input window, operand 1, single buffered']
    #allocation6 [shape = 's32[1]{0}', space=sflag, size = 0x4, scoped, tag = 'scoped memory for tpu_custom_call.1']
    #allocation7 [shape = 'u8[2048]{0}', space=vmem, size = 0x800, scoped, tag = 'output window, operand 0, single buffered']
    %8 = vsyncpa [#allocation3], 0
    %9 = vsyncpa [#allocation6], 0
    %10 = vsyncpa [#allocation4], 0
    // Predicated region
    $region2: #{tpu_custom_call.1} parent=1 // pred_check
      _
    $region3: #{tpu_custom_call.1} parent=1 // pred_check_branch
      %12 = sbr.rel (0) target = $region5
    $region4: #{tpu_custom_call.1} parent=1 // pred_region
      %s14 = ssub.s32 32, 32
      %15 = vsyncadd [#allocation3], %s14
      %s17 = sshll.u32 [#allocation2], 4
      %s18 = int_to_ptr.vmem [resolvable:$true] %s17
      %20 = dma.hbm_to_vmem [thread:$0]  %s0, 32, %s18, [#allocation3]
    $region5: #{tpu_custom_call.1} parent=1 // pred_fallthru
      _
    // Predicated region
    $region6: #{tpu_custom_call.1} parent=1 // pred_check
      _
    $region7: #{tpu_custom_call.1} parent=1 // pred_check_branch
      %22 = sbr.rel (0) target = $region9
    $region8: #{tpu_custom_call.1} parent=1 // pred_region
      %s24 = ssub.s32 512, 512
      %25 = vsyncadd [#allocation6], %s24
      %s26 = sshll.u32 [#allocation5], 4
      %s27 = int_to_ptr.vmem [resolvable:$true] %s26
      %32 = dma.hbm_to_vmem [thread:$0]  %s1, 512, %s27, [#allocation6], 256, 256, 16
    $region9: #{tpu_custom_call.1} parent=1 // pred_fallthru
      _
    // Predicated region
    $region10: #{tpu_custom_call.1} parent=1 // pred_check
      _
    $region11: #{tpu_custom_call.1} parent=1 // pred_check_branch
      %34 = sbr.rel (0) target = $region13
    $region12: #{tpu_custom_call.1} parent=1 // pred_region
      _
    $region13: #{tpu_custom_call.1} parent=1 // pred_fallthru
      _
    // Predicated region
    $region14: #{tpu_custom_call.1} parent=1 // pred_check
      _
    $region15: #{tpu_custom_call.1} parent=1 // pred_check_branch
      %36 = sbr.rel (0) target = $region17
    $region16: #{tpu_custom_call.1} parent=1 // pred_region
      %37 = dma.done [#allocation3], 32
    $region17: #{tpu_custom_call.1} parent=1 // pred_fallthru
      _
    // Predicated region
    $region18: #{tpu_custom_call.1} parent=1 // pred_check
      _
    $region19: #{tpu_custom_call.1} parent=1 // pred_check_branch
      %39 = sbr.rel (0) target = $region21
    $region20: #{tpu_custom_call.1} parent=1 // pred_region
      %40 = dma.done [#allocation6], 512
    $region21: #{tpu_custom_call.1} parent=1 // pred_fallthru
      _
    %v41 = vld [vmem:[#allocation2] sm:$0x3]
    %v42 = vld [vmem:[#allocation5] sm:$0xff]
    %v43 = vld [vmem:[#allocation5 + $0x8] sm:$0xff]
    %v44 = vld [vmem:[#allocation5 + $0x10] sm:$0xff]
    %v45 = vld [vmem:[#allocation5 + $0x18] sm:$0xff]
    %v46 = vld [vmem:[%s2] sm:$0x3]
    %v48 = vlaneseq
    %v49 = vshrl.u32 %v48, 7
    %v50 = vsub.s32 0, %v49
    %v51 = vrot.slane %v46, %v50
    %v52 = vlaneseq
    %v53 = vshrl.u32 %v52, 7
    %v54 = vsub.s32 1, %v53
    %v55 = vrot.slane %v46, %v54
    %vm58 = vcmask 130048
    %v60 = vsel %vm58, %v41, 0
    %62 = vmatprep.subr.mxu0 0.0
    %63 = vmatpush1.msra.mxu0 0.0
    %64 = vmatprep.subr.mxu0 0.0
    %65 = vmatpush1.msra.mxu0 0.0
    %66 = vmatprep.subr.mxu0 0.0
    %67 = vmatpush1.msra.mxu0 0.0
    %68 = vmatprep.subr.mxu0 0.0
    %69 = vmatpush1.msra.mxu0 0.0
    %70 = vmatprep.subr.mxu0 0.0
    %71 = vmatpush1.msra.mxu0 0.0
    %72 = vmatprep.subr.mxu0 0.0
    %73 = vmatpush1.msra.mxu0 0.0
    %74 = vmatprep.subr.mxu0 0.0
    %75 = vmatpush1.msra.mxu0 0.0
    %76 = vmatprep.subr.mxu0 0.0
    %77 = vmatpush1.msra.mxu0 0.0
    %78 = vmatprep.subr.mxu0 0.0
    %79 = vmatpush1.msra.mxu0 0.0
    %80 = vmatprep.subr.mxu0 0.0
    %81 = vmatpush1.msra.mxu0 0.0
    %82 = vmatprep.subr.mxu0 0.0
    %83 = vmatpush1.msra.mxu0 0.0
    %84 = vmatprep.subr.mxu0 0.0
    %85 = vmatpush1.msra.mxu0 0.0
    %86 = vmatprep.subr.mxu0 0.0
    %87 = vmatpush1.msra.mxu0 0.0
    %88 = vmatprep.subr.mxu0 0.0
    %89 = vmatpush1.msra.mxu0 0.0
    %90 = vmatprep.subr.mxu0 %v45
    %91 = vmatpush1.msra.mxu0 %v44
    %92 = vmatprep.subr.mxu0 %v43
    %93 = vmatpush1.msra.mxu0 %v42
    %94 = vmatprep.subr.mxu0 0.0
    %95 = vmatpush2.msra.mxu0 0.0
    %96 = vmatprep.subr.mxu0 0.0
    %97 = vmatpush2.msra.mxu0 0.0
    %98 = vmatprep.subr.mxu0 0.0
    %99 = vmatpush2.msra.mxu0 0.0
    %100 = vmatprep.subr.mxu0 0.0
    %101 = vmatpush2.msra.mxu0 0.0
    %102 = vmatprep.subr.mxu0 0.0
    %103 = vmatpush2.msra.mxu0 0.0
    %104 = vmatprep.subr.mxu0 0.0
    %105 = vmatpush2.msra.mxu0 0.0
    %106 = vmatprep.subr.mxu0 0.0
    %107 = vmatpush2.msra.mxu0 0.0
    %108 = vmatprep.subr.mxu0 0.0
    %109 = vmatpush2.msra.mxu0 0.0
    %110 = vmatprep.subr.mxu0 0.0
    %111 = vmatpush2.msra.mxu0 0.0
    %112 = vmatprep.subr.mxu0 0.0
    %113 = vmatpush2.msra.mxu0 0.0
    %114 = vmatprep.subr.mxu0 0.0
    %115 = vmatpush2.msra.mxu0 0.0
    %116 = vmatprep.subr.mxu0 0.0
    %117 = vmatpush2.msra.mxu0 0.0
    %118 = vmatprep.subr.mxu0 0.0
    %119 = vmatpush2.msra.mxu0 0.0
    %120 = vmatprep.subr.mxu0 0.0
    %121 = vmatpush2.msra.mxu0 0.0
    %122 = vmatprep.subr.mxu0 0.0
    %123 = vmatpush2.msra.mxu0 0.0
    %124 = vmatprep.subr.mxu0 0.0
    %125 = vmatpush2.msra.mxu0 0.0
    %126 = vmatprep.mubr.f32.mxu0 0.0
    %127 = vmatmul.mubr.f32.gmra.mxu0 %v60
    %v128 = vpop.f32.mrf.mxu0
    %v129 = vadd.f32 %v51, %v128
    %v130 = vpop.f32.mrf.mxu0
    %v131 = vadd.f32 %v55, %v130
    %132 = vdwg.mxu0
    %v133 = vmul.f32 %v129, 5.656854
    %v134 = vmul.f32 %v131, 5.656854
    %v137 = vcombine.low %v133, %v134
    %v139 = vunpack.c.l.s4 1983009808
    %v140 = vunpack.c.0.s8 %v139
    %v141 = vlaneseq
    %v142 = vshrl.u32 %v141, 7
    %v143 = vsub.s32 %v140, %v142
    %v144 = vrot.slane %v137, %v143
    %146 = vst [vmem:[#allocation7] sm:$0xf] %v144
    // Predicated region
    $region22: #{tpu_custom_call.1} parent=1 // pred_check
      _
    $region23: #{tpu_custom_call.1} parent=1 // pred_check_branch
      %148 = sbr.rel (0) target = $region25
    $region24: #{tpu_custom_call.1} parent=1 // pred_region
      %s150 = ssub.s32 64, 64
      %151 = vsyncadd [#allocation4], %s150
      %s153 = sshll.u32 [#allocation7], 4
      %s154 = int_to_ptr.vmem [resolvable:$true] %s153
      %156 = dma.vmem_to_hbm [thread:$0]  %s154, 64, %s3, [#allocation4]
    $region25: #{tpu_custom_call.1} parent=1 // pred_fallthru
      _
    // Predicated region
    $region26: #{tpu_custom_call.1} parent=1 // pred_check
      _
    $region27: #{tpu_custom_call.1} parent=1 // pred_check_branch
      %158 = sbr.rel (0) target = $region29
    $region28: #{tpu_custom_call.1} parent=1 // pred_region
      %159 = dma.done [#allocation4], 64
    $region29: #{tpu_custom_call.1} parent=1 // pred_fallthru
      _
    %160 = vsyncpa [#allocation3], 1
    %161 = vsyncpa [#allocation6], 1
    %162 = vsyncpa [#allocation4], 1

</llo_original>
